<compile_context>
chip_gen: v5e
topology: v5e:2x2
jax: 0.10.0
libtpu: 0.0.40
codegen_flags: <defaults>
</compile_context>

<pallas_src>
import functools

import jax
import jax.numpy as jnp
from jax.experimental import pallas as pl
from jax.experimental.pallas import tpu as pltpu


def _basic_block_kernel(x_ref, w1_ref, sh1_ref, w2_ref, sh2_ref, mask_ref,
                        out_ref, stack_ref, *, W, compute_dtype):
    """Fused BasicBlock forward over one batch tile.

    x_ref    : (Cp, TILE_M)        channel-major flat input tile, f32
    w1_ref   : (Cp, 9*Cp)          conv1 im2col weights (BN1 scale folded in)
    sh1_ref  : (Cp, 1)             folded bias+BN1 shift, f32
    w2_ref   : (Cp, 9*Cp)          conv2 im2col weights (BN2 scale folded in)
    sh2_ref  : (Cp, 1)             folded bias+BN2 shift, f32
    mask_ref : (9, 1, TILE_M)      per-tap border-validity multiply mask, f32
    out_ref  : (Cp, TILE_M)        output tile, f32
    stack_ref: (9*Cp, TILE_M)      VMEM scratch: im2col tap stack, compute_dtype
    """
    Cp, M = x_ref.shape

    def conv3x3(src_f32, w_ref):
        # Build the (9*Cp, M) im2col stack (roll along flat M = XLU, mask = VPU
        # multiply, cast per-tap), then a single MXU matmul with f32 accumulate.
        t = 0
        for dh in (-1, 0, 1):
            for dw in (-1, 0, 1):
                shift = (-(dh * W + dw)) % M
                rolled = pltpu.roll(src_f32, shift, 1) if shift else src_f32
                tap = rolled * mask_ref[t]                   # (Cp, M) * (1, M)
                stack_ref[pl.ds(t * Cp, Cp), :] = tap.astype(compute_dtype)
                t += 1
        return jnp.dot(w_ref[...], stack_ref[...],
                       preferred_element_type=jnp.float32)   # (Cp, M) f32

    # conv1 + folded(bias + BN1) + ReLU
    y1 = jnp.maximum(conv3x3(x_ref[...], w1_ref) + sh1_ref[...], 0.0)
    # conv2 + folded(bias + BN2)
    y2 = conv3x3(y1, w2_ref) + sh2_ref[...]
    # residual add (identity shortcut; x re-read here to keep live ranges short)
    out_ref[...] = jnp.maximum(y2 + x_ref[...], 0.0).astype(out_ref.dtype)


def _pick_batch_tile(N, HW, Cp, compute_bytes, budget_bytes):
    """Largest k (images per tile) dividing N, with k*HW % 128 == 0, under budget."""
    per_image = HW * (
        Cp * 4 * 2 * 2                 # x + out tiles, f32, double-buffered
        + 9 * Cp * compute_bytes       # im2col scratch
        + Cp * 4 * 3                   # f32 temporaries (acc / y1 / tap)
        + 9 * 4                        # mask
    )
    k_max = int(max(1, min(N, budget_bytes // max(per_image, 1))))
    for k in range(k_max, 0, -1):
        if N % k == 0 and (k * HW) % 128 == 0:
            return k
    return N   # fall back to whole batch (block equals full array dim)


def basic_block_forward(x_nchw, params, *, compute_dtype=jnp.bfloat16,
                        batch_tile=None, vmem_budget_bytes=12 * 1024 * 1024):
    """BasicBlock forward. x_nchw: (N, C, H, W) f32 -> (N, C, H, W) f32."""
    eps = 1e-5
    N, Cin, H, W = x_nchw.shape
    Cout = params["w1"].shape[0]
    if Cin != Cout:
        raise NotImplementedError("identity shortcut requires inplanes == planes")
    HW = H * W
    M = N * HW

    cbytes = jnp.dtype(compute_dtype).itemsize
    pack = 8 * (4 // cbytes)                       # sublane pack: 8 f32, 16 bf16
    Cp = ((Cin + pack - 1) // pack) * pack         # padded channel count

    if batch_tile is None:
        k = _pick_batch_tile(N, HW, Cp, cbytes, vmem_budget_bytes)
    else:
        k = int(batch_tile)
        assert N % k == 0 and (k == N or (k * HW) % 128 == 0), (
            "batch_tile must divide N and give a tile width multiple of 128")
    TILE_M = k * HW

    # ---- fold conv bias + eval-mode BN into weights / per-channel shift ----
    def fold(w, b, g, be, m, v):
        s = g / jnp.sqrt(v + eps)                              # BN scale
        w_eff = w * s[:, None, None, None]                     # (O, I, 3, 3)
        shift = (b - m) * s + be                               # (O,)
        O, I = w.shape[0], w.shape[1]
        w_eff = jnp.pad(w_eff, ((0, Cp - O), (0, Cp - I), (0, 0), (0, 0)))
        # (O, I, kh, kw) -> (O, kh, kw, I) -> (Cp, 9*Cp); column = t*Cp + cin,
        # t = kh*3 + kw — matches the tap order used to fill the im2col stack.
        w_mat = jnp.transpose(w_eff, (0, 2, 3, 1)).reshape(Cp, 9 * Cp)
        shift = jnp.pad(shift, (0, Cp - O)).reshape(Cp, 1)
        return w_mat.astype(compute_dtype), shift.astype(jnp.float32)

    w1m, sh1 = fold(params["w1"], params["b1"], params["g1"],
                    params["be1"], params["m1"], params["v1"])
    w2m, sh2 = fold(params["w2"], params["b2"], params["g2"],
                    params["be2"], params["m2"], params["v2"])

    # ---- per-tap border-validity multiply mask (batch-invariant) ----
    r = jnp.arange(HW, dtype=jnp.int32) // W
    c = jnp.arange(HW, dtype=jnp.int32) % W
    rows = []
    for dh in (-1, 0, 1):
        for dw in (-1, 0, 1):
            rows.append((r + dh >= 0) & (r + dh < H) &
                        (c + dw >= 0) & (c + dw < W))
    mask = jnp.tile(jnp.stack(rows).astype(jnp.float32), (1, k))
    mask = mask.reshape(9, 1, TILE_M)

    # ---- NCHW -> channel-major flat (Cp, N*H*W), padded channels are zero ----
    x_cm = jnp.transpose(x_nchw, (1, 0, 2, 3)).reshape(Cin, M).astype(jnp.float32)
    x_cm = jnp.pad(x_cm, ((0, Cp - Cin), (0, 0)))

    kernel = functools.partial(_basic_block_kernel, W=W,
                               compute_dtype=compute_dtype)
    out_cm = pl.pallas_call(
        kernel,
        out_shape=jax.ShapeDtypeStruct((Cp, M), jnp.float32),
        grid=(M // TILE_M,),
        in_specs=[
            pl.BlockSpec((Cp, TILE_M), lambda b: (0, b)),        # x tile
            pl.BlockSpec((Cp, 9 * Cp), lambda b: (0, 0)),        # w1 (im2col)
            pl.BlockSpec((Cp, 1), lambda b: (0, 0)),             # shift1
            pl.BlockSpec((Cp, 9 * Cp), lambda b: (0, 0)),        # w2 (im2col)
            pl.BlockSpec((Cp, 1), lambda b: (0, 0)),             # shift2
            pl.BlockSpec((9, 1, TILE_M), lambda b: (0, 0, 0)),   # border mask
        ],
        out_specs=pl.BlockSpec((Cp, TILE_M), lambda b: (0, b)),
        scratch_shapes=[pltpu.VMEM((9 * Cp, TILE_M), compute_dtype)],
        compiler_params=pltpu.CompilerParams(
            dimension_semantics=("parallel",),
            vmem_limit_bytes=32 * 1024 * 1024),
    )(x_cm, w1m, sh1, w2m, sh2, mask)

    # (Cp, N*H*W) -> (N, Cout, H, W)  (drop channel padding)
    out = out_cm[:Cout].reshape(Cout, N, H, W)
    return jnp.transpose(out, (1, 0, 2, 3))


def _reference_forward(x_nchw, params):
    """Pure-JAX reference (same math, XLA conv) for verification."""
    eps = 1e-5
    x = jnp.transpose(x_nchw, (0, 2, 3, 1))
    w1 = jnp.transpose(params["w1"], (2, 3, 1, 0))
    w2 = jnp.transpose(params["w2"], (2, 3, 1, 0))
    dn = ("NHWC", "HWIO", "NHWC")

    def bn(y, g, b, m, v):
        return (y - m) / jnp.sqrt(v + eps) * g + b

    out = jax.lax.conv_general_dilated(x, w1, (1, 1), "SAME",
                                       dimension_numbers=dn) + params["b1"]
    out = jnp.maximum(bn(out, params["g1"], params["be1"],
                         params["m1"], params["v1"]), 0.0)
    out = jax.lax.conv_general_dilated(out, w2, (1, 1), "SAME",
                                       dimension_numbers=dn) + params["b2"]
    out = bn(out, params["g2"], params["be2"], params["m2"], params["v2"])
    out = jnp.maximum(out + x, 0.0)
    return jnp.transpose(out, (0, 3, 1, 2))


def make_params(key, inplanes, planes):
    ks = jax.random.split(key, 12)
    return {
        "w1": 0.1 * jax.random.normal(ks[0], (planes, inplanes, 3, 3), jnp.float32),
        "b1": 0.1 * jax.random.normal(ks[1], (planes,), jnp.float32),
        "g1": 1.0 + 0.1 * jax.random.normal(ks[2], (planes,), jnp.float32),
        "be1": 0.1 * jax.random.normal(ks[3], (planes,), jnp.float32),
        "m1": 0.1 * jax.random.normal(ks[4], (planes,), jnp.float32),
        "v1": jax.random.uniform(ks[5], (planes,), jnp.float32, 0.5, 1.5),
        "w2": 0.1 * jax.random.normal(ks[6], (planes, planes, 3, 3), jnp.float32),
        "b2": 0.1 * jax.random.normal(ks[7], (planes,), jnp.float32),
        "g2": 1.0 + 0.1 * jax.random.normal(ks[8], (planes,), jnp.float32),
        "be2": 0.1 * jax.random.normal(ks[9], (planes,), jnp.float32),
        "m2": 0.1 * jax.random.normal(ks[10], (planes,), jnp.float32),
        "v2": jax.random.uniform(ks[11], (planes,), jnp.float32, 0.5, 1.5),
    }


if __name__ == "__main__":
    key = jax.random.PRNGKey(0)
    k_x, k_p = jax.random.split(key)

    N, C, H, W = 2, 4, 16, 16      # inplanes == planes == 4, stride=1, no downsample
    x = jax.random.normal(k_x, (N, C, H, W), jnp.float32)
    params = make_params(k_p, inplanes=C, planes=C)

    ref = _reference_forward(x, params)

    # f32 MXU-input path: tight match to the XLA reference.
    out = jax.block_until_ready(
        basic_block_forward(x, params, compute_dtype=jnp.float32))
    assert out.shape == (N, C, H, W)
    assert jnp.allclose(out, ref, atol=1e-4, rtol=1e-4), (
        float(jnp.max(jnp.abs(out - ref))))

    # f32 path with batch_tile=1 -> 2-step batch grid (exercises the pipeline).
    out_t = jax.block_until_ready(
        basic_block_forward(x, params, compute_dtype=jnp.float32, batch_tile=1))
    assert jnp.allclose(out_t, ref, atol=1e-4, rtol=1e-4), (
        float(jnp.max(jnp.abs(out_t - ref))))

    # bf16 MXU-input default path (f32 accumulation + f32 elementwise math).
    out_bf16 = jax.block_until_ready(basic_block_forward(x, params))
    assert jnp.allclose(out_bf16, ref, atol=1e-1, rtol=1e-1), (
        float(jnp.max(jnp.abs(out_bf16 - ref))))

    print("KERNEL_OK")
</pallas_src>

<mosaic_0001>
module attributes {stable_mosaic.version = 11 : i64} {
  func.func @_basic_block_kernel(%arg0: i32, %arg1: memref<8x512xf32, #tpu.memory_space<vmem>>, %arg2: memref<8x72xf32, #tpu.memory_space<vmem>>, %arg3: memref<8x1xf32, #tpu.memory_space<vmem>>, %arg4: memref<8x72xf32, #tpu.memory_space<vmem>>, %arg5: memref<8x1xf32, #tpu.memory_space<vmem>>, %arg6: memref<9x1x512xf32, #tpu.memory_space<vmem>>, %arg7: memref<8x512xf32, #tpu.memory_space<vmem>>, %arg8: memref<72x512xf32, #tpu.memory_space<vmem>>) attributes {dimension_semantics = [#tpu.dimension_semantics<parallel>], iteration_bounds = array<i64: 1>, scalar_prefetch = 0 : i64, scratch_operands = 1 : i64, tpu.core_type = #tpu.core_type<tc>, window_params = [{transform_indices = @transform_0, window_bounds = array<i64: 8, 512>}, {pipeline_mode = #tpu.pipeline_mode<synchronous>, transform_indices = @transform_1, window_bounds = array<i64: 8, 72>}, {pipeline_mode = #tpu.pipeline_mode<synchronous>, transform_indices = @transform_2, window_bounds = array<i64: 8, 1>}, {pipeline_mode = #tpu.pipeline_mode<synchronous>, transform_indices = @transform_3, window_bounds = array<i64: 8, 72>}, {pipeline_mode = #tpu.pipeline_mode<synchronous>, transform_indices = @transform_4, window_bounds = array<i64: 8, 1>}, {pipeline_mode = #tpu.pipeline_mode<synchronous>, transform_indices = @transform_5, window_bounds = array<i64: 9, 1, 512>}, {transform_indices = @transform_6, window_bounds = array<i64: 8, 512>}]} {
    %c0 = arith.constant 0 : index
    %c0_0 = arith.constant 0 : index
    %0 = vector.load %arg1[%c0, %c0_0] : memref<8x512xf32, #tpu.memory_space<vmem>>, vector<8x512xf32>
    %c17_i32 = arith.constant 17 : i32
    %1 = tpu.dynamic_rotate %0 by %c17_i32 dim 1 : vector<8x512xf32>, i32 -> vector<8x512xf32>
    %c0_1 = arith.constant 0 : index
    %c0_2 = arith.constant 0 : index
    %c0_3 = arith.constant 0 : index
    %2 = vector.load %arg6[%c0_1, %c0_2, %c0_3] : memref<9x1x512xf32, #tpu.memory_space<vmem>>, vector<1x1x512xf32>
    %3 = vector.shape_cast %2 : vector<1x1x512xf32> to vector<1x512xf32>
    %4 = vector.broadcast %3 : vector<1x512xf32> to vector<8x512xf32>
    %5 = arith.mulf %1, %4 : vector<8x512xf32>
    %c0_4 = arith.constant 0 : index
    %c0_5 = arith.constant 0 : index
    %6 = vector.load %arg8[%c0_4, %c0_5] : memref<72x512xf32, #tpu.memory_space<vmem>>, vector<8x512xf32>
    tpu.vector_store %arg8[%c0_4, %c0_5], %5 {strides = array<i32>} : memref<72x512xf32, #tpu.memory_space<vmem>>, vector<8x512xf32>,
    %c16_i32 = arith.constant 16 : i32
    %7 = tpu.dynamic_rotate %0 by %c16_i32 dim 1 : vector<8x512xf32>, i32 -> vector<8x512xf32>
    %c1 = arith.constant 1 : index
    %c0_6 = arith.constant 0 : index
    %c0_7 = arith.constant 0 : index
    %8 = vector.load %arg6[%c1, %c0_6, %c0_7] : memref<9x1x512xf32, #tpu.memory_space<vmem>>, vector<1x1x512xf32>
    %9 = vector.shape_cast %8 : vector<1x1x512xf32> to vector<1x512xf32>
    %10 = vector.broadcast %9 : vector<1x512xf32> to vector<8x512xf32>
    %11 = arith.mulf %7, %10 : vector<8x512xf32>
    %c8 = arith.constant 8 : index
    %c0_8 = arith.constant 0 : index
    %12 = vector.load %arg8[%c8, %c0_8] : memref<72x512xf32, #tpu.memory_space<vmem>>, vector<8x512xf32>
    tpu.vector_store %arg8[%c8, %c0_8], %11 {strides = array<i32>} : memref<72x512xf32, #tpu.memory_space<vmem>>, vector<8x512xf32>,
    %c15_i32 = arith.constant 15 : i32
    %13 = tpu.dynamic_rotate %0 by %c15_i32 dim 1 : vector<8x512xf32>, i32 -> vector<8x512xf32>
    %c2 = arith.constant 2 : index
    %c0_9 = arith.constant 0 : index
    %c0_10 = arith.constant 0 : index
    %14 = vector.load %arg6[%c2, %c0_9, %c0_10] : memref<9x1x512xf32, #tpu.memory_space<vmem>>, vector<1x1x512xf32>
    %15 = vector.shape_cast %14 : vector<1x1x512xf32> to vector<1x512xf32>
    %16 = vector.broadcast %15 : vector<1x512xf32> to vector<8x512xf32>
    %17 = arith.mulf %13, %16 : vector<8x512xf32>
    %c16 = arith.constant 16 : index
    %c0_11 = arith.constant 0 : index
    %18 = vector.load %arg8[%c16, %c0_11] : memref<72x512xf32, #tpu.memory_space<vmem>>, vector<8x512xf32>
    tpu.vector_store %arg8[%c16, %c0_11], %17 {strides = array<i32>} : memref<72x512xf32, #tpu.memory_space<vmem>>, vector<8x512xf32>,
    %c1_i32 = arith.constant 1 : i32
    %19 = tpu.dynamic_rotate %0 by %c1_i32 dim 1 : vector<8x512xf32>, i32 -> vector<8x512xf32>
    %c3 = arith.constant 3 : index
    %c0_12 = arith.constant 0 : index
    %c0_13 = arith.constant 0 : index
    %20 = vector.load %arg6[%c3, %c0_12, %c0_13] : memref<9x1x512xf32, #tpu.memory_space<vmem>>, vector<1x1x512xf32>
    %21 = vector.shape_cast %20 : vector<1x1x512xf32> to vector<1x512xf32>
    %22 = vector.broadcast %21 : vector<1x512xf32> to vector<8x512xf32>
    %23 = arith.mulf %19, %22 : vector<8x512xf32>
    %c24 = arith.constant 24 : index
    %c0_14 = arith.constant 0 : index
    %24 = vector.load %arg8[%c24, %c0_14] : memref<72x512xf32, #tpu.memory_space<vmem>>, vector<8x512xf32>
    tpu.vector_store %arg8[%c24, %c0_14], %23 {strides = array<i32>} : memref<72x512xf32, #tpu.memory_space<vmem>>, vector<8x512xf32>,
    %c4 = arith.constant 4 : index
    %c0_15 = arith.constant 0 : index
    %c0_16 = arith.constant 0 : index
    %25 = vector.load %arg6[%c4, %c0_15, %c0_16] : memref<9x1x512xf32, #tpu.memory_space<vmem>>, vector<1x1x512xf32>
    %26 = vector.shape_cast %25 : vector<1x1x512xf32> to vector<1x512xf32>
    %27 = vector.broadcast %26 : vector<1x512xf32> to vector<8x512xf32>
    %28 = arith.mulf %0, %27 : vector<8x512xf32>
    %c32 = arith.constant 32 : index
    %c0_17 = arith.constant 0 : index
    %29 = vector.load %arg8[%c32, %c0_17] : memref<72x512xf32, #tpu.memory_space<vmem>>, vector<8x512xf32>
    tpu.vector_store %arg8[%c32, %c0_17], %28 {strides = array<i32>} : memref<72x512xf32, #tpu.memory_space<vmem>>, vector<8x512xf32>,
    %c511_i32 = arith.constant 511 : i32
    %30 = tpu.dynamic_rotate %0 by %c511_i32 dim 1 : vector<8x512xf32>, i32 -> vector<8x512xf32>
    %c5 = arith.constant 5 : index
    %c0_18 = arith.constant 0 : index
    %c0_19 = arith.constant 0 : index
    %31 = vector.load %arg6[%c5, %c0_18, %c0_19] : memref<9x1x512xf32, #tpu.memory_space<vmem>>, vector<1x1x512xf32>
    %32 = vector.shape_cast %31 : vector<1x1x512xf32> to vector<1x512xf32>
    %33 = vector.broadcast %32 : vector<1x512xf32> to vector<8x512xf32>
    %34 = arith.mulf %30, %33 : vector<8x512xf32>
    %c40 = arith.constant 40 : index
    %c0_20 = arith.constant 0 : index
    %35 = vector.load %arg8[%c40, %c0_20] : memref<72x512xf32, #tpu.memory_space<vmem>>, vector<8x512xf32>
    tpu.vector_store %arg8[%c40, %c0_20], %34 {strides = array<i32>} : memref<72x512xf32, #tpu.memory_space<vmem>>, vector<8x512xf32>,
    %c497_i32 = arith.constant 497 : i32
    %36 = tpu.dynamic_rotate %0 by %c497_i32 dim 1 : vector<8x512xf32>, i32 -> vector<8x512xf32>
    %c6 = arith.constant 6 : index
    %c0_21 = arith.constant 0 : index
    %c0_22 = arith.constant 0 : index
    %37 = vector.load %arg6[%c6, %c0_21, %c0_22] : memref<9x1x512xf32, #tpu.memory_space<vmem>>, vector<1x1x512xf32>
    %38 = vector.shape_cast %37 : vector<1x1x512xf32> to vector<1x512xf32>
    %39 = vector.broadcast %38 : vector<1x512xf32> to vector<8x512xf32>
    %40 = arith.mulf %36, %39 : vector<8x512xf32>
    %c48 = arith.constant 48 : index
    %c0_23 = arith.constant 0 : index
    %41 = vector.load %arg8[%c48, %c0_23] : memref<72x512xf32, #tpu.memory_space<vmem>>, vector<8x512xf32>
    tpu.vector_store %arg8[%c48, %c0_23], %40 {strides = array<i32>} : memref<72x512xf32, #tpu.memory_space<vmem>>, vector<8x512xf32>,
    %c496_i32 = arith.constant 496 : i32
    %42 = tpu.dynamic_rotate %0 by %c496_i32 dim 1 : vector<8x512xf32>, i32 -> vector<8x512xf32>
    %c7 = arith.constant 7 : index
    %c0_24 = arith.constant 0 : index
    %c0_25 = arith.constant 0 : index
    %43 = vector.load %arg6[%c7, %c0_24, %c0_25] : memref<9x1x512xf32, #tpu.memory_space<vmem>>, vector<1x1x512xf32>
    %44 = vector.shape_cast %43 : vector<1x1x512xf32> to vector<1x512xf32>
    %45 = vector.broadcast %44 : vector<1x512xf32> to vector<8x512xf32>
    %46 = arith.mulf %42, %45 : vector<8x512xf32>
    %c56 = arith.constant 56 : index
    %c0_26 = arith.constant 0 : index
    %47 = vector.load %arg8[%c56, %c0_26] : memref<72x512xf32, #tpu.memory_space<vmem>>, vector<8x512xf32>
    tpu.vector_store %arg8[%c56, %c0_26], %46 {strides = array<i32>} : memref<72x512xf32, #tpu.memory_space<vmem>>, vector<8x512xf32>,
    %c495_i32 = arith.constant 495 : i32
    %48 = tpu.dynamic_rotate %0 by %c495_i32 dim 1 : vector<8x512xf32>, i32 -> vector<8x512xf32>
    %c8_27 = arith.constant 8 : index
    %c0_28 = arith.constant 0 : index
    %c0_29 = arith.constant 0 : index
    %49 = vector.load %arg6[%c8_27, %c0_28, %c0_29] : memref<9x1x512xf32, #tpu.memory_space<vmem>>, vector<1x1x512xf32>
    %50 = vector.shape_cast %49 : vector<1x1x512xf32> to vector<1x512xf32>
    %51 = vector.broadcast %50 : vector<1x512xf32> to vector<8x512xf32>
    %52 = arith.mulf %48, %51 : vector<8x512xf32>
    %c64 = arith.constant 64 : index
    %c0_30 = arith.constant 0 : index
    %53 = vector.load %arg8[%c64, %c0_30] : memref<72x512xf32, #tpu.memory_space<vmem>>, vector<8x512xf32>
    tpu.vector_store %arg8[%c64, %c0_30], %52 {strides = array<i32>} : memref<72x512xf32, #tpu.memory_space<vmem>>, vector<8x512xf32>,
    %c0_31 = arith.constant 0 : index
    %c0_32 = arith.constant 0 : index
    %54 = vector.load %arg2[%c0_31, %c0_32] : memref<8x72xf32, #tpu.memory_space<vmem>>, vector<8x72xf32>
    %c0_33 = arith.constant 0 : index
    %c0_34 = arith.constant 0 : index
    %55 = vector.load %arg8[%c0_33, %c0_34] : memref<72x512xf32, #tpu.memory_space<vmem>>, vector<72x512xf32>
    %cst = arith.constant dense<0.000000e+00> : vector<8x512xf32>
    %56 = tpu.matmul %54, %55, %cst {dimension_numbers = #tpu.dot_dimension_numbers<[1], [0], [0], [1], [0, 0, 1, 1], [], []>} : vector<8x72xf32>, vector<72x512xf32>, vector<8x512xf32> -> vector<8x512xf32>
    %c0_35 = arith.constant 0 : index
    %c0_36 = arith.constant 0 : index
    %57 = vector.load %arg3[%c0_35, %c0_36] : memref<8x1xf32, #tpu.memory_space<vmem>>, vector<8x1xf32>
    %58 = vector.broadcast %57 : vector<8x1xf32> to vector<8x512xf32>
    %59 = arith.addf %56, %58 : vector<8x512xf32>
    %cst_37 = arith.constant 0.000000e+00 : f32
    %60 = vector.broadcast %cst_37 : f32 to vector<8x512xf32>
    %61 = arith.maximumf %59, %60 : vector<8x512xf32>
    %c17_i32_38 = arith.constant 17 : i32
    %62 = tpu.dynamic_rotate %61 by %c17_i32_38 dim 1 : vector<8x512xf32>, i32 -> vector<8x512xf32>
    %c0_39 = arith.constant 0 : index
    %c0_40 = arith.constant 0 : index
    %c0_41 = arith.constant 0 : index
    %63 = vector.load %arg6[%c0_39, %c0_40, %c0_41] : memref<9x1x512xf32, #tpu.memory_space<vmem>>, vector<1x1x512xf32>
    %64 = vector.shape_cast %63 : vector<1x1x512xf32> to vector<1x512xf32>
    %65 = vector.broadcast %64 : vector<1x512xf32> to vector<8x512xf32>
    %66 = arith.mulf %62, %65 : vector<8x512xf32>
    %c0_42 = arith.constant 0 : index
    %c0_43 = arith.constant 0 : index
    %67 = vector.load %arg8[%c0_42, %c0_43] : memref<72x512xf32, #tpu.memory_space<vmem>>, vector<8x512xf32>
    tpu.vector_store %arg8[%c0_42, %c0_43], %66 {strides = array<i32>} : memref<72x512xf32, #tpu.memory_space<vmem>>, vector<8x512xf32>,
    %c16_i32_44 = arith.constant 16 : i32
    %68 = tpu.dynamic_rotate %61 by %c16_i32_44 dim 1 : vector<8x512xf32>, i32 -> vector<8x512xf32>
    %c1_45 = arith.constant 1 : index
    %c0_46 = arith.constant 0 : index
    %c0_47 = arith.constant 0 : index
    %69 = vector.load %arg6[%c1_45, %c0_46, %c0_47] : memref<9x1x512xf32, #tpu.memory_space<vmem>>, vector<1x1x512xf32>
    %70 = vector.shape_cast %69 : vector<1x1x512xf32> to vector<1x512xf32>
    %71 = vector.broadcast %70 : vector<1x512xf32> to vector<8x512xf32>
    %72 = arith.mulf %68, %71 : vector<8x512xf32>
    %c8_48 = arith.constant 8 : index
    %c0_49 = arith.constant 0 : index
    %73 = vector.load %arg8[%c8_48, %c0_49] : memref<72x512xf32, #tpu.memory_space<vmem>>, vector<8x512xf32>
    tpu.vector_store %arg8[%c8_48, %c0_49], %72 {strides = array<i32>} : memref<72x512xf32, #tpu.memory_space<vmem>>, vector<8x512xf32>,
    %c15_i32_50 = arith.constant 15 : i32
    %74 = tpu.dynamic_rotate %61 by %c15_i32_50 dim 1 : vector<8x512xf32>, i32 -> vector<8x512xf32>
    %c2_51 = arith.constant 2 : index
    %c0_52 = arith.constant 0 : index
    %c0_53 = arith.constant 0 : index
    %75 = vector.load %arg6[%c2_51, %c0_52, %c0_53] : memref<9x1x512xf32, #tpu.memory_space<vmem>>, vector<1x1x512xf32>
    %76 = vector.shape_cast %75 : vector<1x1x512xf32> to vector<1x512xf32>
    %77 = vector.broadcast %76 : vector<1x512xf32> to vector<8x512xf32>
    %78 = arith.mulf %74, %77 : vector<8x512xf32>
    %c16_54 = arith.constant 16 : index
    %c0_55 = arith.constant 0 : index
    %79 = vector.load %arg8[%c16_54, %c0_55] : memref<72x512xf32, #tpu.memory_space<vmem>>, vector<8x512xf32>
    tpu.vector_store %arg8[%c16_54, %c0_55], %78 {strides = array<i32>} : memref<72x512xf32, #tpu.memory_space<vmem>>, vector<8x512xf32>,
    %c1_i32_56 = arith.constant 1 : i32
    %80 = tpu.dynamic_rotate %61 by %c1_i32_56 dim 1 : vector<8x512xf32>, i32 -> vector<8x512xf32>
    %c3_57 = arith.constant 3 : index
    %c0_58 = arith.constant 0 : index
    %c0_59 = arith.constant 0 : index
    %81 = vector.load %arg6[%c3_57, %c0_58, %c0_59] : memref<9x1x512xf32, #tpu.memory_space<vmem>>, vector<1x1x512xf32>
    %82 = vector.shape_cast %81 : vector<1x1x512xf32> to vector<1x512xf32>
    %83 = vector.broadcast %82 : vector<1x512xf32> to vector<8x512xf32>
    %84 = arith.mulf %80, %83 : vector<8x512xf32>
    %c24_60 = arith.constant 24 : index
    %c0_61 = arith.constant 0 : index
    %85 = vector.load %arg8[%c24_60, %c0_61] : memref<72x512xf32, #tpu.memory_space<vmem>>, vector<8x512xf32>
    tpu.vector_store %arg8[%c24_60, %c0_61], %84 {strides = array<i32>} : memref<72x512xf32, #tpu.memory_space<vmem>>, vector<8x512xf32>,
    %c4_62 = arith.constant 4 : index
    %c0_63 = arith.constant 0 : index
    %c0_64 = arith.constant 0 : index
    %86 = vector.load %arg6[%c4_62, %c0_63, %c0_64] : memref<9x1x512xf32, #tpu.memory_space<vmem>>, vector<1x1x512xf32>
    %87 = vector.shape_cast %86 : vector<1x1x512xf32> to vector<1x512xf32>
    %88 = vector.broadcast %87 : vector<1x512xf32> to vector<8x512xf32>
    %89 = arith.mulf %61, %88 : vector<8x512xf32>
    %c32_65 = arith.constant 32 : index
    %c0_66 = arith.constant 0 : index
    %90 = vector.load %arg8[%c32_65, %c0_66] : memref<72x512xf32, #tpu.memory_space<vmem>>, vector<8x512xf32>
    tpu.vector_store %arg8[%c32_65, %c0_66], %89 {strides = array<i32>} : memref<72x512xf32, #tpu.memory_space<vmem>>, vector<8x512xf32>,
    %c511_i32_67 = arith.constant 511 : i32
    %91 = tpu.dynamic_rotate %61 by %c511_i32_67 dim 1 : vector<8x512xf32>, i32 -> vector<8x512xf32>
    %c5_68 = arith.constant 5 : index
    %c0_69 = arith.constant 0 : index
    %c0_70 = arith.constant 0 : index
    %92 = vector.load %arg6[%c5_68, %c0_69, %c0_70] : memref<9x1x512xf32, #tpu.memory_space<vmem>>, vector<1x1x512xf32>
    %93 = vector.shape_cast %92 : vector<1x1x512xf32> to vector<1x512xf32>
    %94 = vector.broadcast %93 : vector<1x512xf32> to vector<8x512xf32>
    %95 = arith.mulf %91, %94 : vector<8x512xf32>
    %c40_71 = arith.constant 40 : index
    %c0_72 = arith.constant 0 : index
    %96 = vector.load %arg8[%c40_71, %c0_72] : memref<72x512xf32, #tpu.memory_space<vmem>>, vector<8x512xf32>
    tpu.vector_store %arg8[%c40_71, %c0_72], %95 {strides = array<i32>} : memref<72x512xf32, #tpu.memory_space<vmem>>, vector<8x512xf32>,
    %c497_i32_73 = arith.constant 497 : i32
    %97 = tpu.dynamic_rotate %61 by %c497_i32_73 dim 1 : vector<8x512xf32>, i32 -> vector<8x512xf32>
    %c6_74 = arith.constant 6 : index
    %c0_75 = arith.constant 0 : index
    %c0_76 = arith.constant 0 : index
    %98 = vector.load %arg6[%c6_74, %c0_75, %c0_76] : memref<9x1x512xf32, #tpu.memory_space<vmem>>, vector<1x1x512xf32>
    %99 = vector.shape_cast %98 : vector<1x1x512xf32> to vector<1x512xf32>
    %100 = vector.broadcast %99 : vector<1x512xf32> to vector<8x512xf32>
    %101 = arith.mulf %97, %100 : vector<8x512xf32>
    %c48_77 = arith.constant 48 : index
    %c0_78 = arith.constant 0 : index
    %102 = vector.load %arg8[%c48_77, %c0_78] : memref<72x512xf32, #tpu.memory_space<vmem>>, vector<8x512xf32>
    tpu.vector_store %arg8[%c48_77, %c0_78], %101 {strides = array<i32>} : memref<72x512xf32, #tpu.memory_space<vmem>>, vector<8x512xf32>,
    %c496_i32_79 = arith.constant 496 : i32
    %103 = tpu.dynamic_rotate %61 by %c496_i32_79 dim 1 : vector<8x512xf32>, i32 -> vector<8x512xf32>
    %c7_80 = arith.constant 7 : index
    %c0_81 = arith.constant 0 : index
    %c0_82 = arith.constant 0 : index
    %104 = vector.load %arg6[%c7_80, %c0_81, %c0_82] : memref<9x1x512xf32, #tpu.memory_space<vmem>>, vector<1x1x512xf32>
    %105 = vector.shape_cast %104 : vector<1x1x512xf32> to vector<1x512xf32>
    %106 = vector.broadcast %105 : vector<1x512xf32> to vector<8x512xf32>
    %107 = arith.mulf %103, %106 : vector<8x512xf32>
    %c56_83 = arith.constant 56 : index
    %c0_84 = arith.constant 0 : index
    %108 = vector.load %arg8[%c56_83, %c0_84] : memref<72x512xf32, #tpu.memory_space<vmem>>, vector<8x512xf32>
    tpu.vector_store %arg8[%c56_83, %c0_84], %107 {strides = array<i32>} : memref<72x512xf32, #tpu.memory_space<vmem>>, vector<8x512xf32>,
    %c495_i32_85 = arith.constant 495 : i32
    %109 = tpu.dynamic_rotate %61 by %c495_i32_85 dim 1 : vector<8x512xf32>, i32 -> vector<8x512xf32>
    %c8_86 = arith.constant 8 : index
    %c0_87 = arith.constant 0 : index
    %c0_88 = arith.constant 0 : index
    %110 = vector.load %arg6[%c8_86, %c0_87, %c0_88] : memref<9x1x512xf32, #tpu.memory_space<vmem>>, vector<1x1x512xf32>
    %111 = vector.shape_cast %110 : vector<1x1x512xf32> to vector<1x512xf32>
    %112 = vector.broadcast %111 : vector<1x512xf32> to vector<8x512xf32>
    %113 = arith.mulf %109, %112 : vector<8x512xf32>
    %c64_89 = arith.constant 64 : index
    %c0_90 = arith.constant 0 : index
    %114 = vector.load %arg8[%c64_89, %c0_90] : memref<72x512xf32, #tpu.memory_space<vmem>>, vector<8x512xf32>
    tpu.vector_store %arg8[%c64_89, %c0_90], %113 {strides = array<i32>} : memref<72x512xf32, #tpu.memory_space<vmem>>, vector<8x512xf32>,
    %c0_91 = arith.constant 0 : index
    %c0_92 = arith.constant 0 : index
    %115 = vector.load %arg4[%c0_91, %c0_92] : memref<8x72xf32, #tpu.memory_space<vmem>>, vector<8x72xf32>
    %c0_93 = arith.constant 0 : index
    %c0_94 = arith.constant 0 : index
    %116 = vector.load %arg8[%c0_93, %c0_94] : memref<72x512xf32, #tpu.memory_space<vmem>>, vector<72x512xf32>
    %cst_95 = arith.constant dense<0.000000e+00> : vector<8x512xf32>
    %117 = tpu.matmul %115, %116, %cst_95 {dimension_numbers = #tpu.dot_dimension_numbers<[1], [0], [0], [1], [0, 0, 1, 1], [], []>} : vector<8x72xf32>, vector<72x512xf32>, vector<8x512xf32> -> vector<8x512xf32>
    %c0_96 = arith.constant 0 : index
    %c0_97 = arith.constant 0 : index
    %118 = vector.load %arg5[%c0_96, %c0_97] : memref<8x1xf32, #tpu.memory_space<vmem>>, vector<8x1xf32>
    %119 = vector.broadcast %118 : vector<8x1xf32> to vector<8x512xf32>
    %120 = arith.addf %117, %119 : vector<8x512xf32>
    %c0_98 = arith.constant 0 : index
    %c0_99 = arith.constant 0 : index
    %121 = vector.load %arg1[%c0_98, %c0_99] : memref<8x512xf32, #tpu.memory_space<vmem>>, vector<8x512xf32>
    %122 = arith.addf %120, %121 : vector<8x512xf32>
    %cst_100 = arith.constant 0.000000e+00 : f32
    %123 = vector.broadcast %cst_100 : f32 to vector<8x512xf32>
    %124 = arith.maximumf %122, %123 : vector<8x512xf32>
    %c0_101 = arith.constant 0 : index
    %c0_102 = arith.constant 0 : index
    %125 = vector.load %arg7[%c0_101, %c0_102] : memref<8x512xf32, #tpu.memory_space<vmem>>, vector<8x512xf32>
    tpu.vector_store %arg7[%c0_101, %c0_102], %124 {strides = array<i32>} : memref<8x512xf32, #tpu.memory_space<vmem>>, vector<8x512xf32>,
    return
  }
  func.func @transform_0(%arg0: i32) -> (i32, i32) {
    %c0_i32 = arith.constant 0 : i32
    %c0_i32_0 = arith.constant 0 : i32
    return %c0_i32, %arg0 : i32, i32
  }
  func.func @transform_1(%arg0: i32) -> (i32, i32) {
    %c0_i32 = arith.constant 0 : i32
    %c0_i32_0 = arith.constant 0 : i32
    %c0_i32_1 = arith.constant 0 : i32
    return %c0_i32, %c0_i32_0 : i32, i32
  }
  func.func @transform_2(%arg0: i32) -> (i32, i32) {
    %c0_i32 = arith.constant 0 : i32
    %c0_i32_0 = arith.constant 0 : i32
    %c0_i32_1 = arith.constant 0 : i32
    return %c0_i32, %c0_i32_0 : i32, i32
  }
  func.func @transform_3(%arg0: i32) -> (i32, i32) {
    %c0_i32 = arith.constant 0 : i32
    %c0_i32_0 = arith.constant 0 : i32
    %c0_i32_1 = arith.constant 0 : i32
    return %c0_i32, %c0_i32_0 : i32, i32
  }
  func.func @transform_4(%arg0: i32) -> (i32, i32) {
    %c0_i32 = arith.constant 0 : i32
    %c0_i32_0 = arith.constant 0 : i32
    %c0_i32_1 = arith.constant 0 : i32
    return %c0_i32, %c0_i32_0 : i32, i32
  }
  func.func @transform_5(%arg0: i32) -> (i32, i32, i32) {
    %c0_i32 = arith.constant 0 : i32
    %c0_i32_0 = arith.constant 0 : i32
    %c0_i32_1 = arith.constant 0 : i32
    %c0_i32_2 = arith.constant 0 : i32
    return %c0_i32, %c0_i32_0, %c0_i32_1 : i32, i32, i32
  }
  func.func @transform_6(%arg0: i32) -> (i32, i32) {
    %c0_i32 = arith.constant 0 : i32
    %c0_i32_0 = arith.constant 0 : i32
    return %c0_i32, %arg0 : i32, i32
  }
}

</mosaic_0001>

<llo_original>
// kernel: tpu_custom_call.1
$region0: #{tpu_custom_call.1}
  #allocation0 [shape = 'u32[]', space=smem, size = 0x4, offset = 0x4, fixed_abs, tag = 'smem constant byte address 0x4 - core index']
  #allocation1 [shape = 'u32[72,128]{1,0:T(1,128)}', space=vmem, size = 0x9000, scoped, tag = 'internal scratch']
  #allocation2 [shape = 'f32[72,512]{1,0:T(8,128)}', space=vmem, size = 0x24000, scoped, tag = 'scratch operand']
  %s0 = inlined_call_operand.hbm [shape: f32[8,512], index: 0, kind: input, shape index: {}]
  %s1 = inlined_call_operand.vmem [shape: f32[8,72], index: 1, kind: input, shape index: {}]
  %s2 = inlined_call_operand.vmem [shape: f32[8,1], index: 2, kind: input, shape index: {}]
  %s3 = inlined_call_operand.vmem [shape: f32[8,72], index: 3, kind: input, shape index: {}]
  %s4 = inlined_call_operand.vmem [shape: f32[8,1], index: 4, kind: input, shape index: {}]
  %s5 = inlined_call_operand.hbm [shape: f32[9,1,512], index: 5, kind: input, shape index: {}]
  %s6 = inlined_call_operand.hbm [shape: f32[8,512], index: 6, kind: output, shape index: {}]
  %s7 = sld [smem:[#allocation0]]
  $region42: #{tpu_custom_call.1} parent=0
    _
  %s9 = ssub.s32 1, %s7
  %s10 = scalar_select 0, %s9, %s7
  $region1: #{tpu_custom_call.1} parent=0
    #allocation3 [shape = 'u8[16384]{0}', space=vmem, size = 0x4000, scoped, tag = 'input window, operand 0, single buffered']
    #allocation4 [shape = 's32[1]{0}', space=sflag, size = 0x4, scoped, tag = 'scoped memory for tpu_custom_call.1']
    #allocation5 [shape = 's32[1]{0}', space=sflag, size = 0x4, scoped, tag = 'scoped memory for tpu_custom_call.1']
    #allocation6 [shape = 'u8[18432]{0}', space=vmem, size = 0x4800, scoped, tag = 'input window, operand 5, single buffered']
    #allocation7 [shape = 's32[1]{0}', space=sflag, size = 0x4, scoped, tag = 'scoped memory for tpu_custom_call.1']
    #allocation8 [shape = 'u8[16384]{0}', space=vmem, size = 0x4000, scoped, tag = 'output window, operand 0, single buffered']
    %11 = vsyncpa [#allocation4], 0
    %12 = vsyncpa [#allocation7], 0
    %13 = vsyncpa [#allocation5], 0
    // Predicated region
    $region2: #{tpu_custom_call.1} parent=1 // pred_check
      _
    $region3: #{tpu_custom_call.1} parent=1 // pred_check_branch
      %15 = sbr.rel (0) target = $region5
    $region4: #{tpu_custom_call.1} parent=1 // pred_region
      %17 = vsyncadd [#allocation4], 0
      %s19 = sshll.u32 %s0, 4
      %s20 = int_to_ptr.hbm [resolvable:$true] %s19
      %s21 = sshll.u32 [#allocation3], 4
      %s22 = int_to_ptr.vmem [resolvable:$true] %s21
      %24 = dma.hbm_to_vmem [thread:$0]  %s20, 512, %s22, [#allocation4]
    $region5: #{tpu_custom_call.1} parent=1 // pred_fallthru
      _
    // Predicated region
    $region6: #{tpu_custom_call.1} parent=1 // pred_check
      _
    $region7: #{tpu_custom_call.1} parent=1 // pred_check_branch
      %26 = sbr.rel (0) target = $region9
    $region8: #{tpu_custom_call.1} parent=1 // pred_region
      _
    $region9: #{tpu_custom_call.1} parent=1 // pred_fallthru
      _
    // Predicated region
    $region10: #{tpu_custom_call.1} parent=1 // pred_check
      _
    $region11: #{tpu_custom_call.1} parent=1 // pred_check_branch
      %28 = sbr.rel (0) target = $region13
    $region12: #{tpu_custom_call.1} parent=1 // pred_region
      _
    $region13: #{tpu_custom_call.1} parent=1 // pred_fallthru
      _
    // Predicated region
    $region14: #{tpu_custom_call.1} parent=1 // pred_check
      _
    $region15: #{tpu_custom_call.1} parent=1 // pred_check_branch
      %30 = sbr.rel (0) target = $region17
    $region16: #{tpu_custom_call.1} parent=1 // pred_region
      _
    $region17: #{tpu_custom_call.1} parent=1 // pred_fallthru
      _
    // Predicated region
    $region18: #{tpu_custom_call.1} parent=1 // pred_check
      _
    $region19: #{tpu_custom_call.1} parent=1 // pred_check_branch
      %32 = sbr.rel (0) target = $region21
    $region20: #{tpu_custom_call.1} parent=1 // pred_region
      _
    $region21: #{tpu_custom_call.1} parent=1 // pred_fallthru
      _
    // Predicated region
    $region22: #{tpu_custom_call.1} parent=1 // pred_check
      _
    $region23: #{tpu_custom_call.1} parent=1 // pred_check_branch
      %34 = sbr.rel (0) target = $region25
    $region24: #{tpu_custom_call.1} parent=1 // pred_region
      %36 = vsyncadd [#allocation7], 0
      %s37 = sshll.u32 %s5, 4
      %s38 = int_to_ptr.hbm [resolvable:$true] %s37
      %s39 = sshll.u32 [#allocation6], 4
      %s40 = int_to_ptr.vmem [resolvable:$true] %s39
      %45 = dma.hbm_to_vmem [thread:$0]  %s38, 576, %s40, [#allocation7], 64, 64, 4
    $region25: #{tpu_custom_call.1} parent=1 // pred_fallthru
      _
    // Predicated region
    $region26: #{tpu_custom_call.1} parent=1 // pred_check
      _
    $region27: #{tpu_custom_call.1} parent=1 // pred_check_branch
      %47 = sbr.rel (0) target = $region29
    $region28: #{tpu_custom_call.1} parent=1 // pred_region
      %49 = dma.done [#allocation4], 512
    $region29: #{tpu_custom_call.1} parent=1 // pred_fallthru
      _
    // Predicated region
    $region30: #{tpu_custom_call.1} parent=1 // pred_check
      _
    $region31: #{tpu_custom_call.1} parent=1 // pred_check_branch
      %51 = sbr.rel (0) target = $region33
    $region32: #{tpu_custom_call.1} parent=1 // pred_region
      %53 = dma.done [#allocation7], 576
    $region33: #{tpu_custom_call.1} parent=1 // pred_fallthru
      _
    %v54 = vld [vmem:[#allocation3] sm:$0xff]
    %v55 = vld [vmem:[#allocation3 + $0x8] sm:$0xff]
    %v56 = vld [vmem:[#allocation3 + $0x10] sm:$0xff]
    %v57 = vld [vmem:[#allocation3 + $0x18] sm:$0xff]
    %58 = vrot.lane.b32.xlu0 %v54, 17
    %v59 = vpop.permute.xlu0 %58
    %60 = vrot.lane.b32.xlu0 %v55, 17
    %v61 = vpop.permute.xlu0 %60
    %62 = vrot.lane.b32.xlu0 %v56, 17
    %v63 = vpop.permute.xlu0 %62
    %64 = vrot.lane.b32.xlu0 %v57, 17
    %v65 = vpop.permute.xlu0 %64
    %v66 = vlaneseq
    %v67 = vand.u32 %v66, 127
    %vm68 = vcmp.lt.s32.totalorder %v67, 17
    %v69 = vsel %vm68, %v63, %v65
    %v70 = vsel %vm68, %v61, %v63
    %v71 = vsel %vm68, %v59, %v61
    %v72 = vsel %vm68, %v65, %v59
    %v73 = vld [vmem:[#allocation6] sm:$0xf]
    %v75 = vperm.slane %v73, 0
    %v76 = vperm.slane %v73, 1
    %v77 = vperm.slane %v73, 2
    %v78 = vperm.slane %v73, 3
    %v83 = vmul.f32 %v72, %v75
    %v84 = vmul.f32 %v71, %v76
    %v85 = vmul.f32 %v70, %v77
    %v86 = vmul.f32 %v69, %v78
    %87 = vst [vmem:[#allocation2] sm:$0xff] %v83
    %88 = vst [vmem:[#allocation2 + $0x8] sm:$0xff] %v84
    %89 = vst [vmem:[#allocation2 + $0x10] sm:$0xff] %v85
    %90 = vst [vmem:[#allocation2 + $0x18] sm:$0xff] %v86
    %91 = vrot.lane.b32.xlu0 %v54, 16
    %v92 = vpop.permute.xlu0 %91
    %93 = vrot.lane.b32.xlu0 %v55, 16
    %v94 = vpop.permute.xlu0 %93
    %95 = vrot.lane.b32.xlu0 %v56, 16
    %v96 = vpop.permute.xlu0 %95
    %97 = vrot.lane.b32.xlu0 %v57, 16
    %v98 = vpop.permute.xlu0 %97
    %vm99 = vcmp.lt.s32.totalorder %v67, 16
    %v100 = vsel %vm99, %v96, %v98
    %v101 = vsel %vm99, %v94, %v96
    %v102 = vsel %vm99, %v92, %v94
    %v103 = vsel %vm99, %v98, %v92
    %s104 = scalar_lea.vmem [#allocation6], 4
    %v105 = vld [vmem:[%s104] sm:$0xf]
    %v107 = vperm.slane %v105, 0
    %v108 = vperm.slane %v105, 1
    %v109 = vperm.slane %v105, 2
    %v110 = vperm.slane %v105, 3
    %v115 = vmul.f32 %v103, %v107
    %v116 = vmul.f32 %v102, %v108
    %v117 = vmul.f32 %v101, %v109
    %v118 = vmul.f32 %v100, %v110
    %119 = vst [vmem:[#allocation2 + $0x20] sm:$0xff] %v115
    %120 = vst [vmem:[#allocation2 + $0x28] sm:$0xff] %v116
    %121 = vst [vmem:[#allocation2 + $0x30] sm:$0xff] %v117
    %122 = vst [vmem:[#allocation2 + $0x38] sm:$0xff] %v118
    %123 = vrot.lane.b32.xlu0 %v54, 15
    %v124 = vpop.permute.xlu0 %123
    %125 = vrot.lane.b32.xlu0 %v55, 15
    %v126 = vpop.permute.xlu0 %125
    %127 = vrot.lane.b32.xlu0 %v56, 15
    %v128 = vpop.permute.xlu0 %127
    %129 = vrot.lane.b32.xlu0 %v57, 15
    %v130 = vpop.permute.xlu0 %129
    %vm131 = vcmp.lt.s32.totalorder %v67, 15
    %v132 = vsel %vm131, %v128, %v130
    %v133 = vsel %vm131, %v126, %v128
    %v134 = vsel %vm131, %v124, %v126
    %v135 = vsel %vm131, %v130, %v124
    %s136 = scalar_lea.vmem [#allocation6], 8
    %v137 = vld [vmem:[%s136] sm:$0xf]
    %v139 = vperm.slane %v137, 0
    %v140 = vperm.slane %v137, 1
    %v141 = vperm.slane %v137, 2
    %v142 = vperm.slane %v137, 3
    %v147 = vmul.f32 %v135, %v139
    %v148 = vmul.f32 %v134, %v140
    %v149 = vmul.f32 %v133, %v141
    %v150 = vmul.f32 %v132, %v142
    %151 = vst [vmem:[#allocation2 + $0x40] sm:$0xff] %v147
    %152 = vst [vmem:[#allocation2 + $0x48] sm:$0xff] %v148
    %153 = vst [vmem:[#allocation2 + $0x50] sm:$0xff] %v149
    %154 = vst [vmem:[#allocation2 + $0x58] sm:$0xff] %v150
    %155 = vrot.lane.b32.xlu0 %v54, 1
    %v156 = vpop.permute.xlu0 %155
    %157 = vrot.lane.b32.xlu0 %v55, 1
    %v158 = vpop.permute.xlu0 %157
    %159 = vrot.lane.b32.xlu0 %v56, 1
    %v160 = vpop.permute.xlu0 %159
    %161 = vrot.lane.b32.xlu0 %v57, 1
    %v162 = vpop.permute.xlu0 %161
    %vm163 = vcmp.lt.s32.totalorder %v67, 1
    %v164 = vsel %vm163, %v160, %v162
    %v165 = vsel %vm163, %v158, %v160
    %v166 = vsel %vm163, %v156, %v158
    %v167 = vsel %vm163, %v162, %v156
    %s168 = scalar_lea.vmem [#allocation6], 12
    %v169 = vld [vmem:[%s168] sm:$0xf]
    %v171 = vperm.slane %v169, 0
    %v172 = vperm.slane %v169, 1
    %v173 = vperm.slane %v169, 2
    %v174 = vperm.slane %v169, 3
    %v179 = vmul.f32 %v167, %v171
    %v180 = vmul.f32 %v166, %v172
    %v181 = vmul.f32 %v165, %v173
    %v182 = vmul.f32 %v164, %v174
    %183 = vst [vmem:[#allocation2 + $0x60] sm:$0xff] %v179
    %184 = vst [vmem:[#allocation2 + $0x68] sm:$0xff] %v180
    %185 = vst [vmem:[#allocation2 + $0x70] sm:$0xff] %v181
    %186 = vst [vmem:[#allocation2 + $0x78] sm:$0xff] %v182
    %s187 = scalar_lea.vmem [#allocation6], 16
    %v188 = vld [vmem:[%s187] sm:$0xf]
    %v190 = vperm.slane %v188, 0
    %v191 = vperm.slane %v188, 1
    %v192 = vperm.slane %v188, 2
    %v193 = vperm.slane %v188, 3
    %v198 = vmul.f32 %v54, %v190
    %v199 = vmul.f32 %v55, %v191
    %v200 = vmul.f32 %v56, %v192
    %v201 = vmul.f32 %v57, %v193
    %202 = vst [vmem:[#allocation2 + $0x80] sm:$0xff] %v198
    %203 = vst [vmem:[#allocation2 + $0x88] sm:$0xff] %v199
    %204 = vst [vmem:[#allocation2 + $0x90] sm:$0xff] %v200
    %205 = vst [vmem:[#allocation2 + $0x98] sm:$0xff] %v201
    %206 = vrot.lane.b32.xlu0 %v54, 127
    %v207 = vpop.permute.xlu0 %206
    %208 = vrot.lane.b32.xlu0 %v55, 127
    %v209 = vpop.permute.xlu0 %208
    %210 = vrot.lane.b32.xlu0 %v56, 127
    %v211 = vpop.permute.xlu0 %210
    %212 = vrot.lane.b32.xlu0 %v57, 127
    %v213 = vpop.permute.xlu0 %212
    %vm214 = vcmp.lt.s32.totalorder %v67, 127
    %v215 = vsel %vm214, %v211, %v213
    %v216 = vsel %vm214, %v209, %v211
    %v217 = vsel %vm214, %v207, %v209
    %v218 = vsel %vm214, %v213, %v207
    %s219 = scalar_lea.vmem [#allocation6], 20
    %v220 = vld [vmem:[%s219] sm:$0xf]
    %v222 = vperm.slane %v220, 0
    %v223 = vperm.slane %v220, 1
    %v224 = vperm.slane %v220, 2
    %v225 = vperm.slane %v220, 3
    %v230 = vmul.f32 %v217, %v222
    %v231 = vmul.f32 %v216, %v223
    %v232 = vmul.f32 %v215, %v224
    %v233 = vmul.f32 %v218, %v225
    %234 = vst [vmem:[#allocation2 + $0xa0] sm:$0xff] %v230
    %235 = vst [vmem:[#allocation2 + $0xa8] sm:$0xff] %v231
    %236 = vst [vmem:[#allocation2 + $0xb0] sm:$0xff] %v232
    %237 = vst [vmem:[#allocation2 + $0xb8] sm:$0xff] %v233
    %238 = vrot.lane.b32.xlu0 %v54, 113
    %v239 = vpop.permute.xlu0 %238
    %240 = vrot.lane.b32.xlu0 %v55, 113
    %v241 = vpop.permute.xlu0 %240
    %242 = vrot.lane.b32.xlu0 %v56, 113
    %v243 = vpop.permute.xlu0 %242
    %244 = vrot.lane.b32.xlu0 %v57, 113
    %v245 = vpop.permute.xlu0 %244
    %vm246 = vcmp.lt.s32.totalorder %v67, 113
    %v247 = vsel %vm246, %v243, %v245
    %v248 = vsel %vm246, %v241, %v243
    %v249 = vsel %vm246, %v239, %v241
    %v250 = vsel %vm246, %v245, %v239
    %s251 = scalar_lea.vmem [#allocation6], 24
    %v252 = vld [vmem:[%s251] sm:$0xf]
    %v254 = vperm.slane %v252, 0
    %v255 = vperm.slane %v252, 1
    %v256 = vperm.slane %v252, 2
    %v257 = vperm.slane %v252, 3
    %v262 = vmul.f32 %v249, %v254
    %v263 = vmul.f32 %v248, %v255
    %v264 = vmul.f32 %v247, %v256
    %v265 = vmul.f32 %v250, %v257
    %266 = vst [vmem:[#allocation2 + $0xc0] sm:$0xff] %v262
    %267 = vst [vmem:[#allocation2 + $0xc8] sm:$0xff] %v263
    %268 = vst [vmem:[#allocation2 + $0xd0] sm:$0xff] %v264
    %269 = vst [vmem:[#allocation2 + $0xd8] sm:$0xff] %v265
    %270 = vrot.lane.b32.xlu0 %v54, 112
    %v271 = vpop.permute.xlu0 %270
    %272 = vrot.lane.b32.xlu0 %v55, 112
    %v273 = vpop.permute.xlu0 %272
    %274 = vrot.lane.b32.xlu0 %v56, 112
    %v275 = vpop.permute.xlu0 %274
    %276 = vrot.lane.b32.xlu0 %v57, 112
    %v277 = vpop.permute.xlu0 %276
    %vm278 = vcmp.lt.s32.totalorder %v67, 112
    %v279 = vsel %vm278, %v275, %v277
    %v280 = vsel %vm278, %v273, %v275
    %v281 = vsel %vm278, %v271, %v273
    %v282 = vsel %vm278, %v277, %v271
    %s283 = scalar_lea.vmem [#allocation6], 28
    %v284 = vld [vmem:[%s283] sm:$0xf]
    %v286 = vperm.slane %v284, 0
    %v287 = vperm.slane %v284, 1
    %v288 = vperm.slane %v284, 2
    %v289 = vperm.slane %v284, 3
    %v294 = vmul.f32 %v281, %v286
    %v295 = vmul.f32 %v280, %v287
    %v296 = vmul.f32 %v279, %v288
    %v297 = vmul.f32 %v282, %v289
    %298 = vst [vmem:[#allocation2 + $0xe0] sm:$0xff] %v294
    %299 = vst [vmem:[#allocation2 + $0xe8] sm:$0xff] %v295
    %300 = vst [vmem:[#allocation2 + $0xf0] sm:$0xff] %v296
    %301 = vst [vmem:[#allocation2 + $0xf8] sm:$0xff] %v297
    %302 = vrot.lane.b32.xlu0 %v54, 111
    %v303 = vpop.permute.xlu0 %302
    %304 = vrot.lane.b32.xlu0 %v55, 111
    %v305 = vpop.permute.xlu0 %304
    %306 = vrot.lane.b32.xlu0 %v56, 111
    %v307 = vpop.permute.xlu0 %306
    %308 = vrot.lane.b32.xlu0 %v57, 111
    %v309 = vpop.permute.xlu0 %308
    %vm310 = vcmp.lt.s32.totalorder %v67, 111
    %v311 = vsel %vm310, %v307, %v309
    %v312 = vsel %vm310, %v305, %v307
    %v313 = vsel %vm310, %v303, %v305
    %v314 = vsel %vm310, %v309, %v303
    %s315 = scalar_lea.vmem [#allocation6], 32
    %v316 = vld [vmem:[%s315] sm:$0xf]
    %v318 = vperm.slane %v316, 0
    %v319 = vperm.slane %v316, 1
    %v320 = vperm.slane %v316, 2
    %v321 = vperm.slane %v316, 3
    %v326 = vmul.f32 %v313, %v318
    %v327 = vmul.f32 %v312, %v319
    %v328 = vmul.f32 %v311, %v320
    %v329 = vmul.f32 %v314, %v321
    %330 = vst [vmem:[#allocation2 + $0x100] sm:$0xff] %v326
    %331 = vst [vmem:[#allocation2 + $0x108] sm:$0xff] %v327
    %332 = vst [vmem:[#allocation2 + $0x110] sm:$0xff] %v328
    %333 = vst [vmem:[#allocation2 + $0x118] sm:$0xff] %v329
    %v334 = vld [vmem:[%s1] sm:$0xff]
    %v335 = vld [vmem:[#allocation2] sm:$0xff]
    %v336 = vld [vmem:[#allocation2 + $0x8] sm:$0xff]
    %v337 = vld [vmem:[#allocation2 + $0x10] sm:$0xff]
    %v338 = vld [vmem:[#allocation2 + $0x18] sm:$0xff]
    %v339 = vld [vmem:[#allocation2 + $0x20] sm:$0xff]
    %v340 = vld [vmem:[#allocation2 + $0x28] sm:$0xff]
    %v341 = vld [vmem:[#allocation2 + $0x30] sm:$0xff]
    %v342 = vld [vmem:[#allocation2 + $0x38] sm:$0xff]
    %v343 = vld [vmem:[#allocation2 + $0x40] sm:$0xff]
    %v344 = vld [vmem:[#allocation2 + $0x48] sm:$0xff]
    %v345 = vld [vmem:[#allocation2 + $0x50] sm:$0xff]
    %v346 = vld [vmem:[#allocation2 + $0x58] sm:$0xff]
    %v347 = vld [vmem:[#allocation2 + $0x60] sm:$0xff]
    %v348 = vld [vmem:[#allocation2 + $0x68] sm:$0xff]
    %v349 = vld [vmem:[#allocation2 + $0x70] sm:$0xff]
    %v350 = vld [vmem:[#allocation2 + $0x78] sm:$0xff]
    %v351 = vld [vmem:[#allocation2 + $0x80] sm:$0xff]
    %v352 = vld [vmem:[#allocation2 + $0x88] sm:$0xff]
    %v353 = vld [vmem:[#allocation2 + $0x90] sm:$0xff]
    %v354 = vld [vmem:[#allocation2 + $0x98] sm:$0xff]
    %v355 = vld [vmem:[#allocation2 + $0xa0] sm:$0xff]
    %v356 = vld [vmem:[#allocation2 + $0xa8] sm:$0xff]
    %v357 = vld [vmem:[#allocation2 + $0xb0] sm:$0xff]
    %v358 = vld [vmem:[#allocation2 + $0xb8] sm:$0xff]
    %v359 = vld [vmem:[#allocation2 + $0xc0] sm:$0xff]
    %v360 = vld [vmem:[#allocation2 + $0xc8] sm:$0xff]
    %v361 = vld [vmem:[#allocation2 + $0xd0] sm:$0xff]
    %v362 = vld [vmem:[#allocation2 + $0xd8] sm:$0xff]
    %v363 = vld [vmem:[#allocation2 + $0xe0] sm:$0xff]
    %v364 = vld [vmem:[#allocation2 + $0xe8] sm:$0xff]
    %v365 = vld [vmem:[#allocation2 + $0xf0] sm:$0xff]
    %v366 = vld [vmem:[#allocation2 + $0xf8] sm:$0xff]
    %v367 = vld [vmem:[#allocation2 + $0x100] sm:$0xff]
    %v368 = vld [vmem:[#allocation2 + $0x108] sm:$0xff]
    %v369 = vld [vmem:[#allocation2 + $0x110] sm:$0xff]
    %v370 = vld [vmem:[#allocation2 + $0x118] sm:$0xff]
    %v371 = vld [vmem:[%s2] sm:$0xff]
    %373 = vset.pattern.permute.xlu0 0
    %374 = vperm.xlu0 %373, %v371
    %v375 = vpop.permute.xlu0 %374
    %vm377 = vcmask 588800
    %v379 = vsel %vm377, %v334, 0
    %381 = vmatpush.msra.mxu0 0.0
    %382 = vmatpush.msra.mxu0 0.0
    %383 = vmatpush.msra.mxu0 0.0
    %384 = vmatpush.msra.mxu0 0.0
    %385 = vmatpush.msra.mxu0 0.0
    %386 = vmatpush.msra.mxu0 0.0
    %387 = vmatpush.msra.mxu0 0.0
    %388 = vmatpush.msra.mxu0 %v367
    %389 = vmatpush.msra.mxu0 %v363
    %390 = vmatpush.msra.mxu0 %v359
    %391 = vmatpush.msra.mxu0 %v355
    %392 = vmatpush.msra.mxu0 %v351
    %393 = vmatpush.msra.mxu0 %v347
    %394 = vmatpush.msra.mxu0 %v343
    %395 = vmatpush.msra.mxu0 %v339
    %396 = vmatpush.msra.mxu0 %v335
    %397 = vmatmul.f32.gmra.mxu0 %v379
    %v398 = vpop.f32.mrf.mxu0
    %v399 = vadd.f32 %v375, %v398
    %400 = vdwg.mxu0
    %401 = vmatpush.msra.mxu0 0.0
    %402 = vmatpush.msra.mxu0 0.0
    %403 = vmatpush.msra.mxu0 0.0
    %404 = vmatpush.msra.mxu0 0.0
    %405 = vmatpush.msra.mxu0 0.0
    %406 = vmatpush.msra.mxu0 0.0
    %407 = vmatpush.msra.mxu0 0.0
    %408 = vmatpush.msra.mxu0 %v368
    %409 = vmatpush.msra.mxu0 %v364
    %410 = vmatpush.msra.mxu0 %v360
    %411 = vmatpush.msra.mxu0 %v356
    %412 = vmatpush.msra.mxu0 %v352
    %413 = vmatpush.msra.mxu0 %v348
    %414 = vmatpush.msra.mxu0 %v344
    %415 = vmatpush.msra.mxu0 %v340
    %416 = vmatpush.msra.mxu0 %v336
    %417 = vmatmul.f32.gmra.mxu0 %v379
    %v418 = vpop.f32.mrf.mxu0
    %v419 = vadd.f32 %v375, %v418
    %420 = vdwg.mxu0
    %421 = vmatpush.msra.mxu0 0.0
    %422 = vmatpush.msra.mxu0 0.0
    %423 = vmatpush.msra.mxu0 0.0
    %424 = vmatpush.msra.mxu0 0.0
    %425 = vmatpush.msra.mxu0 0.0
    %426 = vmatpush.msra.mxu0 0.0
    %427 = vmatpush.msra.mxu0 0.0
    %428 = vmatpush.msra.mxu0 %v369
    %429 = vmatpush.msra.mxu0 %v365
    %430 = vmatpush.msra.mxu0 %v361
    %431 = vmatpush.msra.mxu0 %v357
    %432 = vmatpush.msra.mxu0 %v353
    %433 = vmatpush.msra.mxu0 %v349
    %434 = vmatpush.msra.mxu0 %v345
    %435 = vmatpush.msra.mxu0 %v341
    %436 = vmatpush.msra.mxu0 %v337
    %437 = vmatmul.f32.gmra.mxu0 %v379
    %v438 = vpop.f32.mrf.mxu0
    %v439 = vadd.f32 %v375, %v438
    %440 = vdwg.mxu0
    %441 = vmatpush.msra.mxu0 0.0
    %442 = vmatpush.msra.mxu0 0.0
    %443 = vmatpush.msra.mxu0 0.0
    %444 = vmatpush.msra.mxu0 0.0
    %445 = vmatpush.msra.mxu0 0.0
    %446 = vmatpush.msra.mxu0 0.0
    %447 = vmatpush.msra.mxu0 0.0
    %448 = vmatpush.msra.mxu0 %v370
    %449 = vmatpush.msra.mxu0 %v366
    %450 = vmatpush.msra.mxu0 %v362
    %451 = vmatpush.msra.mxu0 %v358
    %452 = vmatpush.msra.mxu0 %v354
    %453 = vmatpush.msra.mxu0 %v350
    %454 = vmatpush.msra.mxu0 %v346
    %455 = vmatpush.msra.mxu0 %v342
    %456 = vmatpush.msra.mxu0 %v338
    %457 = vmatmul.f32.gmra.mxu0 %v379
    %v458 = vpop.f32.mrf.mxu0
    %v459 = vadd.f32 %v375, %v458
    %460 = vdwg.mxu0
    %v461 = vmax.f32 %v399, 0.0
    %v462 = vmax.f32 %v419, 0.0
    %v463 = vmax.f32 %v439, 0.0
    %v464 = vmax.f32 %v459, 0.0
    %465 = vrot.lane.b32.xlu0 %v461, 17
    %v466 = vpop.permute.xlu0 %465
    %467 = vrot.lane.b32.xlu0 %v462, 17
    %v468 = vpop.permute.xlu0 %467
    %469 = vrot.lane.b32.xlu0 %v463, 17
    %v470 = vpop.permute.xlu0 %469
    %471 = vrot.lane.b32.xlu0 %v464, 17
    %v472 = vpop.permute.xlu0 %471
    %v473 = vsel %vm68, %v470, %v472
    %v474 = vsel %vm68, %v468, %v470
    %v475 = vsel %vm68, %v466, %v468
    %v476 = vsel %vm68, %v472, %v466
    %v477 = vld [vmem:[#allocation6] sm:$0xf]
    %v479 = vperm.slane %v477, 0
    %v480 = vperm.slane %v477, 1
    %v481 = vperm.slane %v477, 2
    %v482 = vperm.slane %v477, 3
    %v487 = vmul.f32 %v476, %v479
    %v488 = vmul.f32 %v475, %v480
    %v489 = vmul.f32 %v474, %v481
    %v490 = vmul.f32 %v473, %v482
    %491 = vst [vmem:[#allocation2] sm:$0xff] %v487
    %492 = vst [vmem:[#allocation2 + $0x8] sm:$0xff] %v488
    %493 = vst [vmem:[#allocation2 + $0x10] sm:$0xff] %v489
    %494 = vst [vmem:[#allocation2 + $0x18] sm:$0xff] %v490
    %495 = vrot.lane.b32.xlu0 %v461, 16
    %v496 = vpop.permute.xlu0 %495
    %497 = vrot.lane.b32.xlu0 %v462, 16
    %v498 = vpop.permute.xlu0 %497
    %499 = vrot.lane.b32.xlu0 %v463, 16
    %v500 = vpop.permute.xlu0 %499
    %501 = vrot.lane.b32.xlu0 %v464, 16
    %v502 = vpop.permute.xlu0 %501
    %v503 = vsel %vm99, %v500, %v502
    %v504 = vsel %vm99, %v498, %v500
    %v505 = vsel %vm99, %v496, %v498
    %v506 = vsel %vm99, %v502, %v496
    %v507 = vld [vmem:[%s104] sm:$0xf]
    %v509 = vperm.slane %v507, 0
    %v510 = vperm.slane %v507, 1
    %v511 = vperm.slane %v507, 2
    %v512 = vperm.slane %v507, 3
    %v517 = vmul.f32 %v506, %v509
    %v518 = vmul.f32 %v505, %v510
    %v519 = vmul.f32 %v504, %v511
    %v520 = vmul.f32 %v503, %v512
    %521 = vst [vmem:[#allocation2 + $0x20] sm:$0xff] %v517
    %522 = vst [vmem:[#allocation2 + $0x28] sm:$0xff] %v518
    %523 = vst [vmem:[#allocation2 + $0x30] sm:$0xff] %v519
    %524 = vst [vmem:[#allocation2 + $0x38] sm:$0xff] %v520
    %525 = vrot.lane.b32.xlu0 %v461, 15
    %v526 = vpop.permute.xlu0 %525
    %527 = vrot.lane.b32.xlu0 %v462, 15
    %v528 = vpop.permute.xlu0 %527
    %529 = vrot.lane.b32.xlu0 %v463, 15
    %v530 = vpop.permute.xlu0 %529
    %531 = vrot.lane.b32.xlu0 %v464, 15
    %v532 = vpop.permute.xlu0 %531
    %v533 = vsel %vm131, %v530, %v532
    %v534 = vsel %vm131, %v528, %v530
    %v535 = vsel %vm131, %v526, %v528
    %v536 = vsel %vm131, %v532, %v526
    %v537 = vld [vmem:[%s136] sm:$0xf]
    %v539 = vperm.slane %v537, 0
    %v540 = vperm.slane %v537, 1
    %v541 = vperm.slane %v537, 2
    %v542 = vperm.slane %v537, 3
    %v547 = vmul.f32 %v536, %v539
    %v548 = vmul.f32 %v535, %v540
    %v549 = vmul.f32 %v534, %v541
    %v550 = vmul.f32 %v533, %v542
    %551 = vst [vmem:[#allocation2 + $0x40] sm:$0xff] %v547
    %552 = vst [vmem:[#allocation2 + $0x48] sm:$0xff] %v548
    %553 = vst [vmem:[#allocation2 + $0x50] sm:$0xff] %v549
    %554 = vst [vmem:[#allocation2 + $0x58] sm:$0xff] %v550
    %555 = vrot.lane.b32.xlu0 %v461, 1
    %v556 = vpop.permute.xlu0 %555
    %557 = vrot.lane.b32.xlu0 %v462, 1
    %v558 = vpop.permute.xlu0 %557
    %559 = vrot.lane.b32.xlu0 %v463, 1
    %v560 = vpop.permute.xlu0 %559
    %561 = vrot.lane.b32.xlu0 %v464, 1
    %v562 = vpop.permute.xlu0 %561
    %v563 = vsel %vm163, %v560, %v562
    %v564 = vsel %vm163, %v558, %v560
    %v565 = vsel %vm163, %v556, %v558
    %v566 = vsel %vm163, %v562, %v556
    %v567 = vld [vmem:[%s168] sm:$0xf]
    %v569 = vperm.slane %v567, 0
    %v570 = vperm.slane %v567, 1
    %v571 = vperm.slane %v567, 2
    %v572 = vperm.slane %v567, 3
    %v577 = vmul.f32 %v566, %v569
    %v578 = vmul.f32 %v565, %v570
    %v579 = vmul.f32 %v564, %v571
    %v580 = vmul.f32 %v563, %v572
    %581 = vst [vmem:[#allocation2 + $0x60] sm:$0xff] %v577
    %582 = vst [vmem:[#allocation2 + $0x68] sm:$0xff] %v578
    %583 = vst [vmem:[#allocation2 + $0x70] sm:$0xff] %v579
    %584 = vst [vmem:[#allocation2 + $0x78] sm:$0xff] %v580
    %v585 = vld [vmem:[%s187] sm:$0xf]
    %v587 = vperm.slane %v585, 0
    %v588 = vperm.slane %v585, 1
    %v589 = vperm.slane %v585, 2
    %v590 = vperm.slane %v585, 3
    %v595 = vmul.f32 %v461, %v587
    %v596 = vmul.f32 %v462, %v588
    %v597 = vmul.f32 %v463, %v589
    %v598 = vmul.f32 %v464, %v590
    %599 = vst [vmem:[#allocation2 + $0x80] sm:$0xff] %v595
    %600 = vst [vmem:[#allocation2 + $0x88] sm:$0xff] %v596
    %601 = vst [vmem:[#allocation2 + $0x90] sm:$0xff] %v597
    %602 = vst [vmem:[#allocation2 + $0x98] sm:$0xff] %v598
    %603 = vrot.lane.b32.xlu0 %v461, 127
    %v604 = vpop.permute.xlu0 %603
    %605 = vrot.lane.b32.xlu0 %v462, 127
    %v606 = vpop.permute.xlu0 %605
    %607 = vrot.lane.b32.xlu0 %v463, 127
    %v608 = vpop.permute.xlu0 %607
    %609 = vrot.lane.b32.xlu0 %v464, 127
    %v610 = vpop.permute.xlu0 %609
    %v611 = vsel %vm214, %v608, %v610
    %v612 = vsel %vm214, %v606, %v608
    %v613 = vsel %vm214, %v604, %v606
    %v614 = vsel %vm214, %v610, %v604
    %v615 = vld [vmem:[%s219] sm:$0xf]
    %v617 = vperm.slane %v615, 0
    %v618 = vperm.slane %v615, 1
    %v619 = vperm.slane %v615, 2
    %v620 = vperm.slane %v615, 3
    %v625 = vmul.f32 %v613, %v617
    %v626 = vmul.f32 %v612, %v618
    %v627 = vmul.f32 %v611, %v619
    %v628 = vmul.f32 %v614, %v620
    %629 = vst [vmem:[#allocation2 + $0xa0] sm:$0xff] %v625
    %630 = vst [vmem:[#allocation2 + $0xa8] sm:$0xff] %v626
    %631 = vst [vmem:[#allocation2 + $0xb0] sm:$0xff] %v627
    %632 = vst [vmem:[#allocation2 + $0xb8] sm:$0xff] %v628
    %633 = vrot.lane.b32.xlu0 %v461, 113
    %v634 = vpop.permute.xlu0 %633
    %635 = vrot.lane.b32.xlu0 %v462, 113
    %v636 = vpop.permute.xlu0 %635
    %637 = vrot.lane.b32.xlu0 %v463, 113
    %v638 = vpop.permute.xlu0 %637
    %639 = vrot.lane.b32.xlu0 %v464, 113
    %v640 = vpop.permute.xlu0 %639
    %v641 = vsel %vm246, %v638, %v640
    %v642 = vsel %vm246, %v636, %v638
    %v643 = vsel %vm246, %v634, %v636
    %v644 = vsel %vm246, %v640, %v634
    %v645 = vld [vmem:[%s251] sm:$0xf]
    %v647 = vperm.slane %v645, 0
    %v648 = vperm.slane %v645, 1
    %v649 = vperm.slane %v645, 2
    %v650 = vperm.slane %v645, 3
    %v655 = vmul.f32 %v643, %v647
    %v656 = vmul.f32 %v642, %v648
    %v657 = vmul.f32 %v641, %v649
    %v658 = vmul.f32 %v644, %v650
    %659 = vst [vmem:[#allocation2 + $0xc0] sm:$0xff] %v655
    %660 = vst [vmem:[#allocation2 + $0xc8] sm:$0xff] %v656
    %661 = vst [vmem:[#allocation2 + $0xd0] sm:$0xff] %v657
    %662 = vst [vmem:[#allocation2 + $0xd8] sm:$0xff] %v658
    %663 = vrot.lane.b32.xlu0 %v461, 112
    %v664 = vpop.permute.xlu0 %663
    %665 = vrot.lane.b32.xlu0 %v462, 112
    %v666 = vpop.permute.xlu0 %665
    %667 = vrot.lane.b32.xlu0 %v463, 112
    %v668 = vpop.permute.xlu0 %667
    %669 = vrot.lane.b32.xlu0 %v464, 112
    %v670 = vpop.permute.xlu0 %669
    %v671 = vsel %vm278, %v668, %v670
    %v672 = vsel %vm278, %v666, %v668
    %v673 = vsel %vm278, %v664, %v666
    %v674 = vsel %vm278, %v670, %v664
    %v675 = vld [vmem:[%s283] sm:$0xf]
    %v677 = vperm.slane %v675, 0
    %v678 = vperm.slane %v675, 1
    %v679 = vperm.slane %v675, 2
    %v680 = vperm.slane %v675, 3
    %v685 = vmul.f32 %v673, %v677
    %v686 = vmul.f32 %v672, %v678
    %v687 = vmul.f32 %v671, %v679
    %v688 = vmul.f32 %v674, %v680
    %689 = vst [vmem:[#allocation2 + $0xe0] sm:$0xff] %v685
    %690 = vst [vmem:[#allocation2 + $0xe8] sm:$0xff] %v686
    %691 = vst [vmem:[#allocation2 + $0xf0] sm:$0xff] %v687
    %692 = vst [vmem:[#allocation2 + $0xf8] sm:$0xff] %v688
    %693 = vrot.lane.b32.xlu0 %v461, 111
    %v694 = vpop.permute.xlu0 %693
    %695 = vrot.lane.b32.xlu0 %v462, 111
    %v696 = vpop.permute.xlu0 %695
    %697 = vrot.lane.b32.xlu0 %v463, 111
    %v698 = vpop.permute.xlu0 %697
    %699 = vrot.lane.b32.xlu0 %v464, 111
    %v700 = vpop.permute.xlu0 %699
    %v701 = vsel %vm310, %v698, %v700
    %v702 = vsel %vm310, %v696, %v698
    %v703 = vsel %vm310, %v694, %v696
    %v704 = vsel %vm310, %v700, %v694
    %v705 = vld [vmem:[%s315] sm:$0xf]
    %v707 = vperm.slane %v705, 0
    %v708 = vperm.slane %v705, 1
    %v709 = vperm.slane %v705, 2
    %v710 = vperm.slane %v705, 3
    %v715 = vmul.f32 %v703, %v707
    %v716 = vmul.f32 %v702, %v708
    %v717 = vmul.f32 %v701, %v709
    %v718 = vmul.f32 %v704, %v710
    %719 = vst [vmem:[#allocation2 + $0x100] sm:$0xff] %v715
    %720 = vst [vmem:[#allocation2 + $0x108] sm:$0xff] %v716
    %721 = vst [vmem:[#allocation2 + $0x110] sm:$0xff] %v717
    %722 = vst [vmem:[#allocation2 + $0x118] sm:$0xff] %v718
    %v723 = vld [vmem:[%s3] sm:$0xff]
    %v724 = vld [vmem:[#allocation2] sm:$0xff]
    %v725 = vld [vmem:[#allocation2 + $0x8] sm:$0xff]
    %v726 = vld [vmem:[#allocation2 + $0x10] sm:$0xff]
    %v727 = vld [vmem:[#allocation2 + $0x18] sm:$0xff]
    %v728 = vld [vmem:[#allocation2 + $0x20] sm:$0xff]
    %v729 = vld [vmem:[#allocation2 + $0x28] sm:$0xff]
    %v730 = vld [vmem:[#allocation2 + $0x30] sm:$0xff]
    %v731 = vld [vmem:[#allocation2 + $0x38] sm:$0xff]
    %v732 = vld [vmem:[#allocation2 + $0x40] sm:$0xff]
    %v733 = vld [vmem:[#allocation2 + $0x48] sm:$0xff]
    %v734 = vld [vmem:[#allocation2 + $0x50] sm:$0xff]
    %v735 = vld [vmem:[#allocation2 + $0x58] sm:$0xff]
    %v736 = vld [vmem:[#allocation2 + $0x60] sm:$0xff]
    %v737 = vld [vmem:[#allocation2 + $0x68] sm:$0xff]
    %v738 = vld [vmem:[#allocation2 + $0x70] sm:$0xff]
    %v739 = vld [vmem:[#allocation2 + $0x78] sm:$0xff]
    %v740 = vld [vmem:[#allocation2 + $0x80] sm:$0xff]
    %v741 = vld [vmem:[#allocation2 + $0x88] sm:$0xff]
    %v742 = vld [vmem:[#allocation2 + $0x90] sm:$0xff]
    %v743 = vld [vmem:[#allocation2 + $0x98] sm:$0xff]
    %v744 = vld [vmem:[#allocation2 + $0xa0] sm:$0xff]
    %v745 = vld [vmem:[#allocation2 + $0xa8] sm:$0xff]
    %v746 = vld [vmem:[#allocation2 + $0xb0] sm:$0xff]
    %v747 = vld [vmem:[#allocation2 + $0xb8] sm:$0xff]
    %v748 = vld [vmem:[#allocation2 + $0xc0] sm:$0xff]
    %v749 = vld [vmem:[#allocation2 + $0xc8] sm:$0xff]
    %v750 = vld [vmem:[#allocation2 + $0xd0] sm:$0xff]
    %v751 = vld [vmem:[#allocation2 + $0xd8] sm:$0xff]
    %v752 = vld [vmem:[#allocation2 + $0xe0] sm:$0xff]
    %v753 = vld [vmem:[#allocation2 + $0xe8] sm:$0xff]
    %v754 = vld [vmem:[#allocation2 + $0xf0] sm:$0xff]
    %v755 = vld [vmem:[#allocation2 + $0xf8] sm:$0xff]
    %v756 = vld [vmem:[#allocation2 + $0x100] sm:$0xff]
    %v757 = vld [vmem:[#allocation2 + $0x108] sm:$0xff]
    %v758 = vld [vmem:[#allocation2 + $0x110] sm:$0xff]
    %v759 = vld [vmem:[#allocation2 + $0x118] sm:$0xff]
    %v760 = vld [vmem:[%s4] sm:$0xff]
    %762 = vset.pattern.permute.xlu0 0
    %763 = vperm.xlu0 %762, %v760
    %v764 = vpop.permute.xlu0 %763
    %v767 = vsel %vm377, %v723, 0
    %769 = vmatpush.msra.mxu0 0.0
    %770 = vmatpush.msra.mxu0 0.0
    %771 = vmatpush.msra.mxu0 0.0
    %772 = vmatpush.msra.mxu0 0.0
    %773 = vmatpush.msra.mxu0 0.0
    %774 = vmatpush.msra.mxu0 0.0
    %775 = vmatpush.msra.mxu0 0.0
    %776 = vmatpush.msra.mxu0 %v756
    %777 = vmatpush.msra.mxu0 %v752
    %778 = vmatpush.msra.mxu0 %v748
    %779 = vmatpush.msra.mxu0 %v744
    %780 = vmatpush.msra.mxu0 %v740
    %781 = vmatpush.msra.mxu0 %v736
    %782 = vmatpush.msra.mxu0 %v732
    %783 = vmatpush.msra.mxu0 %v728
    %784 = vmatpush.msra.mxu0 %v724
    %785 = vmatmul.f32.gmra.mxu0 %v767
    %v786 = vpop.f32.mrf.mxu0
    %v787 = vadd.f32 %v764, %v786
    %788 = vdwg.mxu0
    %789 = vmatpush.msra.mxu0 0.0
    %790 = vmatpush.msra.mxu0 0.0
    %791 = vmatpush.msra.mxu0 0.0
    %792 = vmatpush.msra.mxu0 0.0
    %793 = vmatpush.msra.mxu0 0.0
    %794 = vmatpush.msra.mxu0 0.0
    %795 = vmatpush.msra.mxu0 0.0
    %796 = vmatpush.msra.mxu0 %v757
    %797 = vmatpush.msra.mxu0 %v753
    %798 = vmatpush.msra.mxu0 %v749
    %799 = vmatpush.msra.mxu0 %v745
    %800 = vmatpush.msra.mxu0 %v741
    %801 = vmatpush.msra.mxu0 %v737
    %802 = vmatpush.msra.mxu0 %v733
    %803 = vmatpush.msra.mxu0 %v729
    %804 = vmatpush.msra.mxu0 %v725
    %805 = vmatmul.f32.gmra.mxu0 %v767
    %v806 = vpop.f32.mrf.mxu0
    %v807 = vadd.f32 %v764, %v806
    %808 = vdwg.mxu0
    %809 = vmatpush.msra.mxu0 0.0
    %810 = vmatpush.msra.mxu0 0.0
    %811 = vmatpush.msra.mxu0 0.0
    %812 = vmatpush.msra.mxu0 0.0
    %813 = vmatpush.msra.mxu0 0.0
    %814 = vmatpush.msra.mxu0 0.0
    %815 = vmatpush.msra.mxu0 0.0
    %816 = vmatpush.msra.mxu0 %v758
    %817 = vmatpush.msra.mxu0 %v754
    %818 = vmatpush.msra.mxu0 %v750
    %819 = vmatpush.msra.mxu0 %v746
    %820 = vmatpush.msra.mxu0 %v742
    %821 = vmatpush.msra.mxu0 %v738
    %822 = vmatpush.msra.mxu0 %v734
    %823 = vmatpush.msra.mxu0 %v730
    %824 = vmatpush.msra.mxu0 %v726
    %825 = vmatmul.f32.gmra.mxu0 %v767
    %v826 = vpop.f32.mrf.mxu0
    %v827 = vadd.f32 %v764, %v826
    %828 = vdwg.mxu0
    %829 = vmatpush.msra.mxu0 0.0
    %830 = vmatpush.msra.mxu0 0.0
    %831 = vmatpush.msra.mxu0 0.0
    %832 = vmatpush.msra.mxu0 0.0
    %833 = vmatpush.msra.mxu0 0.0
    %834 = vmatpush.msra.mxu0 0.0
    %835 = vmatpush.msra.mxu0 0.0
    %836 = vmatpush.msra.mxu0 %v759
    %837 = vmatpush.msra.mxu0 %v755
    %838 = vmatpush.msra.mxu0 %v751
    %839 = vmatpush.msra.mxu0 %v747
    %840 = vmatpush.msra.mxu0 %v743
    %841 = vmatpush.msra.mxu0 %v739
    %842 = vmatpush.msra.mxu0 %v735
    %843 = vmatpush.msra.mxu0 %v731
    %844 = vmatpush.msra.mxu0 %v727
    %845 = vmatmul.f32.gmra.mxu0 %v767
    %v846 = vpop.f32.mrf.mxu0
    %v847 = vadd.f32 %v764, %v846
    %848 = vdwg.mxu0
    %v849 = vld [vmem:[#allocation3] sm:$0xff]
    %v850 = vld [vmem:[#allocation3 + $0x8] sm:$0xff]
    %v851 = vld [vmem:[#allocation3 + $0x10] sm:$0xff]
    %v852 = vld [vmem:[#allocation3 + $0x18] sm:$0xff]
    %v853 = vadd.f32 %v787, %v849
    %v854 = vadd.f32 %v807, %v850
    %v855 = vadd.f32 %v827, %v851
    %v856 = vadd.f32 %v847, %v852
    %v857 = vmax.f32 %v853, 0.0
    %v858 = vmax.f32 %v854, 0.0
    %v859 = vmax.f32 %v855, 0.0
    %v860 = vmax.f32 %v856, 0.0
    %861 = vst [vmem:[#allocation8] sm:$0xff] %v857
    %862 = vst [vmem:[#allocation8 + $0x8] sm:$0xff] %v858
    %863 = vst [vmem:[#allocation8 + $0x10] sm:$0xff] %v859
    %864 = vst [vmem:[#allocation8 + $0x18] sm:$0xff] %v860
    // Predicated region
    $region34: #{tpu_custom_call.1} parent=1 // pred_check
      _
    $region35: #{tpu_custom_call.1} parent=1 // pred_check_branch
      %866 = sbr.rel (0) target = $region37
    $region36: #{tpu_custom_call.1} parent=1 // pred_region
      %868 = vsyncadd [#allocation5], 0
      %s870 = sshll.u32 [#allocation8], 4
      %s871 = int_to_ptr.vmem [resolvable:$true] %s870
      %s872 = sshll.u32 %s6, 4
      %s873 = int_to_ptr.hbm [resolvable:$true] %s872
      %875 = dma.vmem_to_hbm [thread:$0]  %s871, 512, %s873, [#allocation5]
    $region37: #{tpu_custom_call.1} parent=1 // pred_fallthru
      _
    // Predicated region
    $region38: #{tpu_custom_call.1} parent=1 // pred_check
      _
    $region39: #{tpu_custom_call.1} parent=1 // pred_check_branch
      %877 = sbr.rel (0) target = $region41
    $region40: #{tpu_custom_call.1} parent=1 // pred_region
      %879 = dma.done [#allocation5], 512
    $region41: #{tpu_custom_call.1} parent=1 // pred_fallthru
      _
    %880 = vsyncpa [#allocation4], 1
    %881 = vsyncpa [#allocation7], 1
    %882 = vsyncpa [#allocation5], 1

</llo_original>
